<compile_context>
chip_gen: v6e
topology: v6e:2x2x1
jax: 0.10.0
libtpu: 0.0.40
codegen_flags: <defaults>
</compile_context>

<pallas_src>
import functools

import jax
import jax.numpy as jnp
from jax.experimental import pallas as pl
from jax.experimental.pallas import tpu as pltpu

LANE = 128                    # lane width (fast axis)
MAX_BLK_ROWS = 8192           # 8192*128*4 B = 4 MiB per f32 input tile
CHUNK_ROWS = 512              # in-kernel elementwise sub-chunk (256 KiB f32 temps)
_VMEM_LIMIT_BYTES = 32 * 1024 * 1024


def _round_up(x, m):
    return ((x + m - 1) // m) * m


def _min_sublanes(dtype):
    # f32 -> 8, bf16/f16 -> 16, int8/uint8/fp8 -> 32 (packed-sublane tiling).
    return {1: 32, 2: 16, 4: 8}.get(jnp.dtype(dtype).itemsize, 8)


def _dice_kernel(i_ref, t_ref, o_it_ref, o_tt_ref, *,
                 blk_rows, chunk_rows, n_blocks, last_valid_rows, needs_mask):
    step = pl.program_id(0)

    @pl.when(step == 0)
    def _():
        o_it_ref[...] = jnp.zeros_like(o_it_ref)   # running per-(row%chunk, lane) sum(x*t)
        o_tt_ref[...] = jnp.zeros_like(o_tt_ref)   # running per-(row%chunk, lane) sum(t*t)

    def accum_chunk(row0, valid_rows=None):
        x = i_ref[pl.ds(row0, chunk_rows), :].astype(jnp.float32)
        t = t_ref[pl.ds(row0, chunk_rows), :].astype(jnp.float32)
        xt = x * t
        tt = t * t
        if valid_rows is not None:
            # Only the ragged tail chunk of the LAST block pays this path.
            rid = jax.lax.broadcasted_iota(jnp.int32, (chunk_rows, LANE), 0)
            keep = rid < valid_rows
            # select (not multiply-by-mask): drops NaN/Inf garbage in padded rows
            xt = jnp.where(keep, xt, 0.0)
            tt = jnp.where(keep, tt, 0.0)
        o_it_ref[...] += xt
        o_tt_ref[...] += tt

    n_chunks = blk_rows // chunk_rows

    def run_chunks(num_full):
        if num_full == 1:
            accum_chunk(0)
        elif num_full > 1:
            def body(c, carry):
                accum_chunk(pl.multiple_of(c * chunk_rows, chunk_rows))
                return carry
            jax.lax.fori_loop(0, num_full, body, 0)

    def full_block():
        run_chunks(n_chunks)

    def last_partial_block():
        # Everything below is static Python: last block structure is known at trace time.
        n_full = last_valid_rows // chunk_rows
        rem = last_valid_rows % chunk_rows
        run_chunks(n_full)
        if rem:
            accum_chunk(n_full * chunk_rows, valid_rows=rem)

    if not needs_mask:
        full_block()
    elif n_blocks == 1:
        last_partial_block()
    else:
        @pl.when(step < n_blocks - 1)
        def _():
            full_block()

        @pl.when(step == n_blocks - 1)
        def _():
            last_partial_block()


def _lane_partial_sums(x2d, t2d, rows):
    """Streams (rows, 128) native-dtype inputs; returns (chunk_rows, 128) f32
    partial sums of x*t and t*t (total = jnp.sum of each output)."""
    sub = max(_min_sublanes(x2d.dtype), _min_sublanes(t2d.dtype))
    if rows <= CHUNK_ROWS:
        blk_rows = _round_up(rows, sub)
        chunk_rows = blk_rows
    else:
        blk_rows = min(MAX_BLK_ROWS, _round_up(rows, CHUNK_ROWS))
        chunk_rows = CHUNK_ROWS
    n_blocks = pl.cdiv(rows, blk_rows)
    needs_mask = (rows % blk_rows) != 0
    last_valid_rows = rows - (n_blocks - 1) * blk_rows

    kernel = functools.partial(
        _dice_kernel, blk_rows=blk_rows, chunk_rows=chunk_rows,
        n_blocks=n_blocks, last_valid_rows=last_valid_rows,
        needs_mask=needs_mask)

    out_sd = jax.ShapeDtypeStruct((chunk_rows, LANE), jnp.float32)
    out_spec = pl.BlockSpec((chunk_rows, LANE), lambda i: (0, 0))

    it_part, tt_part = pl.pallas_call(
        kernel,
        out_shape=(out_sd, out_sd),
        grid_spec=pltpu.PrefetchScalarGridSpec(
            num_scalar_prefetch=0,
            grid=(n_blocks,),
            in_specs=[
                pl.BlockSpec((blk_rows, LANE), lambda i: (i, 0)),
                pl.BlockSpec((blk_rows, LANE), lambda i: (i, 0)),
            ],
            out_specs=[out_spec, out_spec],
        ),
        compiler_params=pltpu.CompilerParams(
            dimension_semantics=("arbitrary",),
            vmem_limit_bytes=_VMEM_LIMIT_BYTES),
    )(x2d, t2d)
    return it_part, tt_part


def dice_loss(inp, target):
    smooth = jnp.float32(1.0)
    x = inp.reshape(-1)
    t = target.reshape(-1)
    # Narrow dtypes (bf16 / int8 / uint8) stream natively through the kernel
    # (fewer HBM bytes ~= proportional wall-clock win); only bool gets a tiny
    # byte-width-preserving convert so Pallas sees an integer ref.
    if x.dtype == jnp.bool_:
        x = x.astype(jnp.uint8)
    if t.dtype == jnp.bool_:
        t = t.astype(jnp.uint8)

    n = x.shape[0]
    rows = n // LANE
    tail = n - rows * LANE

    it_sum = jnp.float32(0.0)
    tt_sum = jnp.float32(0.0)

    if rows > 0:
        if tail:
            # TODO(synk): the 128-aligned prefix slice still costs one HBM copy
            # for ragged flat lengths; a fully zero-copy ragged path needs a
            # manual-DMA (pl.ANY) kernel.  The common n % 128 == 0 case is zero-copy.
            x_main = x[: rows * LANE]
            t_main = t[: rows * LANE]
        else:
            x_main, t_main = x, t
        it_part, tt_part = _lane_partial_sums(
            x_main.reshape(rows, LANE), t_main.reshape(rows, LANE), rows)
        it_sum = it_sum + jnp.sum(it_part)
        tt_sum = tt_sum + jnp.sum(tt_part)

    if tail:
        # <=127-element ragged tail folded in plain JAX (negligible work).
        x_tail = x[rows * LANE:].astype(jnp.float32)
        t_tail = t[rows * LANE:].astype(jnp.float32)
        it_sum = it_sum + jnp.sum(x_tail * t_tail)
        tt_sum = tt_sum + jnp.sum(t_tail * t_tail)

    intersection = it_sum        # sum(iflat * tflat)
    a_sum = it_sum               # sum(tflat * iflat) == intersection
    b_sum = tt_sum               # sum(tflat * tflat)
    return 1.0 - (2.0 * intersection + smooth) / (a_sum + b_sum + smooth)


def dice_loss_ref(inp, target):
    iflat = inp.reshape(-1).astype(jnp.float32)
    tflat = target.reshape(-1).astype(jnp.float32)
    smooth = 1.0
    intersection = jnp.sum(iflat * tflat)
    a_sum = jnp.sum(tflat * iflat)
    b_sum = jnp.sum(tflat * tflat)
    return 1.0 - (2.0 * intersection + smooth) / (a_sum + b_sum + smooth)


if __name__ == "__main__":
    key = jax.random.PRNGKey(0)
    k1, k2, k3, k4, k5, k6 = jax.random.split(key, 6)
    dice = jax.jit(dice_loss)

    # 1) NCHW segmentation-style pair, n % 128 == 0 (zero-copy fast path).
    x1 = jax.nn.sigmoid(jax.random.normal(k1, (2, 4, 16, 16), dtype=jnp.float32))
    y1 = (jax.random.uniform(k2, (2, 4, 16, 16)) > 0.5).astype(jnp.float32)
    l1 = jax.block_until_ready(dice(x1, y1))
    r1 = jax.block_until_ready(dice_loss_ref(x1, y1))
    assert jnp.allclose(l1, r1, rtol=1e-5, atol=1e-5), (l1, r1)

    # 2) Ragged flat length (945 = 7*128 + 49): masked last block + wrapper tail fold.
    x2 = jax.nn.sigmoid(jax.random.normal(k3, (3, 5, 7, 9), dtype=jnp.float32))
    y2 = (jax.random.uniform(k4, (3, 5, 7, 9)) > 0.5).astype(jnp.float32)
    l2 = jax.block_until_ready(dice(x2, y2))
    r2 = jax.block_until_ready(dice_loss_ref(x2, y2))
    assert jnp.allclose(l2, r2, rtol=1e-5, atol=1e-5), (l2, r2)

    # 3) Narrow-dtype streaming: bf16 predictions + f32 mask (in-kernel upcast).
    x3 = x1.astype(jnp.bfloat16)
    l3 = jax.block_until_ready(dice(x3, y1))
    r3 = jax.block_until_ready(dice_loss_ref(x3, y1))
    assert jnp.allclose(l3, r3, rtol=1e-4, atol=1e-4), (l3, r3)

    # 4) Multi-block + chunked inner loop (rows = 10240 > 8192).
    x4 = jax.nn.sigmoid(jax.random.normal(k5, (2, 8, 160, 512), dtype=jnp.float32))
    y4 = (jax.random.uniform(k6, (2, 8, 160, 512)) > 0.5).astype(jnp.float32)
    l4 = jax.block_until_ready(dice(x4, y4))
    r4 = jax.block_until_ready(dice_loss_ref(x4, y4))
    assert jnp.allclose(l4, r4, rtol=1e-4, atol=1e-4), (l4, r4)

    print("KERNEL_OK")
</pallas_src>

<mosaic_0001>
module attributes {stable_mosaic.version = 11 : i64} {
  func.func @_dice_kernel(%arg0: i32, %arg1: memref<16x128xf32, #tpu.memory_space<vmem>>, %arg2: memref<16x128xf32, #tpu.memory_space<vmem>>, %arg3: memref<16x128xf32, #tpu.memory_space<vmem>>, %arg4: memref<16x128xf32, #tpu.memory_space<vmem>>) attributes {dimension_semantics = [#tpu.dimension_semantics<arbitrary>], iteration_bounds = array<i64: 1>, scalar_prefetch = 0 : i64, scratch_operands = 0 : i64, tpu.core_type = #tpu.core_type<tc>, window_params = [{transform_indices = @transform_0, window_bounds = array<i64: 16, 128>}, {transform_indices = @transform_1, window_bounds = array<i64: 16, 128>}, {pipeline_mode = #tpu.pipeline_mode<synchronous>, transform_indices = @transform_2, window_bounds = array<i64: 16, 128>}, {pipeline_mode = #tpu.pipeline_mode<synchronous>, transform_indices = @transform_3, window_bounds = array<i64: 16, 128>}]} {
    %c0_i32 = arith.constant 0 : i32
    %0 = arith.cmpi eq, %arg0, %c0_i32 : i32
    %1 = arith.extui %0 : i1 to i32
    %c0_i32_0 = arith.constant 0 : i32
    %2 = arith.cmpi ne, %1, %c0_i32_0 : i32
    scf.if %2 {
      %cst = arith.constant 0.000000e+00 : f32
      %13 = vector.broadcast %cst : f32 to vector<16x128xf32>
      %c0_12 = arith.constant 0 : index
      %c0_13 = arith.constant 0 : index
      %14 = vector.load %arg3[%c0_12, %c0_13] : memref<16x128xf32, #tpu.memory_space<vmem>>, vector<16x128xf32>
      tpu.vector_store %arg3[%c0_12, %c0_13], %13 {strides = array<i32>} : memref<16x128xf32, #tpu.memory_space<vmem>>, vector<16x128xf32>,
      %cst_14 = arith.constant 0.000000e+00 : f32
      %15 = vector.broadcast %cst_14 : f32 to vector<16x128xf32>
      %c0_15 = arith.constant 0 : index
      %c0_16 = arith.constant 0 : index
      %16 = vector.load %arg4[%c0_15, %c0_16] : memref<16x128xf32, #tpu.memory_space<vmem>>, vector<16x128xf32>
      tpu.vector_store %arg4[%c0_15, %c0_16], %15 {strides = array<i32>} : memref<16x128xf32, #tpu.memory_space<vmem>>, vector<16x128xf32>,
    } else {
    }
    %c0 = arith.constant 0 : index
    %c0_1 = arith.constant 0 : index
    %3 = vector.load %arg1[%c0, %c0_1] : memref<16x128xf32, #tpu.memory_space<vmem>>, vector<16x128xf32>
    %c0_2 = arith.constant 0 : index
    %c0_3 = arith.constant 0 : index
    %4 = vector.load %arg2[%c0_2, %c0_3] : memref<16x128xf32, #tpu.memory_space<vmem>>, vector<16x128xf32>
    %5 = arith.mulf %3, %4 : vector<16x128xf32>
    %6 = arith.mulf %4, %4 : vector<16x128xf32>
    %c0_4 = arith.constant 0 : index
    %c0_5 = arith.constant 0 : index
    %7 = vector.load %arg3[%c0_4, %c0_5] : memref<16x128xf32, #tpu.memory_space<vmem>>, vector<16x128xf32>
    %8 = arith.addf %7, %5 : vector<16x128xf32>
    %c0_6 = arith.constant 0 : index
    %c0_7 = arith.constant 0 : index
    %9 = vector.load %arg3[%c0_6, %c0_7] : memref<16x128xf32, #tpu.memory_space<vmem>>, vector<16x128xf32>
    tpu.vector_store %arg3[%c0_6, %c0_7], %8 {strides = array<i32>} : memref<16x128xf32, #tpu.memory_space<vmem>>, vector<16x128xf32>,
    %c0_8 = arith.constant 0 : index
    %c0_9 = arith.constant 0 : index
    %10 = vector.load %arg4[%c0_8, %c0_9] : memref<16x128xf32, #tpu.memory_space<vmem>>, vector<16x128xf32>
    %11 = arith.addf %10, %6 : vector<16x128xf32>
    %c0_10 = arith.constant 0 : index
    %c0_11 = arith.constant 0 : index
    %12 = vector.load %arg4[%c0_10, %c0_11] : memref<16x128xf32, #tpu.memory_space<vmem>>, vector<16x128xf32>
    tpu.vector_store %arg4[%c0_10, %c0_11], %11 {strides = array<i32>} : memref<16x128xf32, #tpu.memory_space<vmem>>, vector<16x128xf32>,
    return
  }
  func.func @transform_0(%arg0: i32) -> (i32, i32) {
    %c0_i32 = arith.constant 0 : i32
    %c0_i32_0 = arith.constant 0 : i32
    return %arg0, %c0_i32 : i32, i32
  }
  func.func @transform_1(%arg0: i32) -> (i32, i32) {
    %c0_i32 = arith.constant 0 : i32
    %c0_i32_0 = arith.constant 0 : i32
    return %arg0, %c0_i32 : i32, i32
  }
  func.func @transform_2(%arg0: i32) -> (i32, i32) {
    %c0_i32 = arith.constant 0 : i32
    %c0_i32_0 = arith.constant 0 : i32
    %c0_i32_1 = arith.constant 0 : i32
    return %c0_i32, %c0_i32_0 : i32, i32
  }
  func.func @transform_3(%arg0: i32) -> (i32, i32) {
    %c0_i32 = arith.constant 0 : i32
    %c0_i32_0 = arith.constant 0 : i32
    %c0_i32_1 = arith.constant 0 : i32
    return %c0_i32, %c0_i32_0 : i32, i32
  }
}

</mosaic_0001>

<llo_original>
// kernel: dice_loss.1
$region0: #{dice_loss.1}
  #allocation0 [shape = 'u32[]', space=smem, size = 0x4, offset = 0x4, fixed_abs, tag = 'smem constant byte address 0x4 - core index']
  #allocation1 [shape = 'u32[144,128]{1,0:T(1,128)}', space=vmem, size = 0x12000, scoped, tag = 'internal scratch']
  %s0 = inlined_call_operand.vmem [shape: f32[16,128], index: 0, kind: input, shape index: {}]
  %s1 = inlined_call_operand.vmem [shape: f32[16,128], index: 1, kind: input, shape index: {}]
  %s2 = inlined_call_operand.vmem [shape: f32[16,128], index: 2, kind: output, shape index: {0}]
  %s3 = inlined_call_operand.vmem [shape: f32[16,128], index: 3, kind: output, shape index: {1}]
  %4 = xla_tuple %s2, %s3
  %s5 = sld [smem:[#allocation0]]
  $region30: #{dice_loss.1} parent=0
    _
  %s7 = ssub.s32 1, %s5
  %s8 = scalar_select 0, %s7, %s5
  // Predicated region
  $region2: #{dice_loss.1} parent=0 // pred_check
    _
  $region3: #{dice_loss.1} parent=0 // pred_check_branch
    %10 = sbr.rel (0) target = $region5
  $region4: #{dice_loss.1} parent=0 // pred_region
    _
  $region5: #{dice_loss.1} parent=0 // pred_fallthru
    _
  // Predicated region
  $region6: #{dice_loss.1} parent=0 // pred_check
    _
  $region7: #{dice_loss.1} parent=0 // pred_check_branch
    %12 = sbr.rel (0) target = $region9
  $region8: #{dice_loss.1} parent=0 // pred_region
    _
  $region9: #{dice_loss.1} parent=0 // pred_fallthru
    _
  %p13 = scmp.eq.s32.totalorder 0, 0
  // Predicated region
  $region10: #{dice_loss.1} parent=0 // pred_check
    %p14 = pneg %p13
  $region11: #{dice_loss.1} parent=0 // pred_check_branch
    %16 = sbr.rel (%p14) target = $region13
  $region12: #{dice_loss.1} parent=0 // pred_region
    %17 = vst [vmem:[%s2] sm:$0xff] 0.0
    %18 = vst [vmem:[%s2 + $0x8] sm:$0xff] 0.0
    %19 = vst [vmem:[%s3] sm:$0xff] 0.0
    %20 = vst [vmem:[%s3 + $0x8] sm:$0xff] 0.0
  $region13: #{dice_loss.1} parent=0 // pred_fallthru
    _
  %v21 = vld [vmem:[%s0] sm:$0xff]
  %v22 = vld [vmem:[%s0 + $0x8] sm:$0xff]
  %v23 = vld [vmem:[%s1] sm:$0xff]
  %v24 = vld [vmem:[%s1 + $0x8] sm:$0xff]
  %v25 = vmul.f32 %v21, %v23
  %v26 = vmul.f32 %v22, %v24
  %v27 = vmul.f32 %v23, %v23
  %v28 = vmul.f32 %v24, %v24
  %v29 = vld [vmem:[%s2] sm:$0xff]
  %v30 = vld [vmem:[%s2 + $0x8] sm:$0xff]
  %v31 = vadd.f32 %v29, %v25
  %v32 = vadd.f32 %v30, %v26
  %33 = vst [vmem:[%s2] sm:$0xff] %v31
  %34 = vst [vmem:[%s2 + $0x8] sm:$0xff] %v32
  %v35 = vld [vmem:[%s3] sm:$0xff]
  %v36 = vld [vmem:[%s3 + $0x8] sm:$0xff]
  %v37 = vadd.f32 %v35, %v27
  %v38 = vadd.f32 %v36, %v28
  %39 = vst [vmem:[%s3] sm:$0xff] %v37
  %40 = vst [vmem:[%s3 + $0x8] sm:$0xff] %v38
  // Predicated region
  $region14: #{dice_loss.1} parent=0 // pred_check
    _
  $region15: #{dice_loss.1} parent=0 // pred_check_branch
    %42 = sbr.rel (0) target = $region17
  $region16: #{dice_loss.1} parent=0 // pred_region
    _
  $region17: #{dice_loss.1} parent=0 // pred_fallthru
    _
  // Predicated region
  $region18: #{dice_loss.1} parent=0 // pred_check
    _
  $region19: #{dice_loss.1} parent=0 // pred_check_branch
    %44 = sbr.rel (0) target = $region21
  $region20: #{dice_loss.1} parent=0 // pred_region
    _
  $region21: #{dice_loss.1} parent=0 // pred_fallthru
    _
  // Predicated region
  $region22: #{dice_loss.1} parent=0 // pred_check
    _
  $region23: #{dice_loss.1} parent=0 // pred_check_branch
    %46 = sbr.rel (0) target = $region25
  $region24: #{dice_loss.1} parent=0 // pred_region
    _
  $region25: #{dice_loss.1} parent=0 // pred_fallthru
    _
  // Predicated region
  $region26: #{dice_loss.1} parent=0 // pred_check
    _
  $region27: #{dice_loss.1} parent=0 // pred_check_branch
    %48 = sbr.rel (0) target = $region29
  $region28: #{dice_loss.1} parent=0 // pred_region
    _
  $region29: #{dice_loss.1} parent=0 // pred_fallthru
    _

</llo_original>
